<compile_context>
chip_gen: v7x
topology: tpu7x:2x2x1
jax: 0.10.0
libtpu: 0.0.40
codegen_flags: <defaults>
</compile_context>

<pallas_src>
import functools
import math

import jax
import jax.numpy as jnp
from jax import lax
from jax.experimental import pallas as pl
from jax.experimental.pallas import tpu as pltpu

_MIB = 1024 * 1024


def _memory_fuse_kernel(fm_ref, fq_ref, o_ref, *, inv_sqrt_c, channels_last_out,
                        exp_dtype):
    # fm_ref: (1, C, THW), fq_ref: (1, C, hw_tile)
    # o_ref : (1, hw_tile, C) if channels_last_out else (1, C, hw_tile)
    fm = fm_ref[0]                                              # (C, THW)
    fq = fq_ref[0] * jnp.asarray(inv_sqrt_c, fq_ref.dtype)      # fold 1/sqrt(C)

    # Scores (hw, THW): contract C with C -- no transposes, f32 MXU accumulate.
    s = lax.dot_general(fq, fm, (((0,), (0,)), ((), ())),
                        preferred_element_type=jnp.float32)

    # Unnormalized softmax over THW (lane axis == torch softmax(dim=1)).
    # bf16 exp on v6e/v7x (exp_dtype) doubles EUP throughput; sum stays f32.
    s_max = jnp.max(s, axis=-1, keepdims=True)
    p = jnp.exp((s - s_max).astype(exp_dtype))                  # (hw, THW)
    l = jnp.sum(p, axis=-1, keepdims=True, dtype=jnp.float32)   # (hw, 1)
    inv_l = pl.reciprocal(l, approx=True)                       # EUP slot

    p = p.astype(fm_ref.dtype)  # bf16 MXU rate when inputs are bf16

    if channels_last_out:
        # (hw, C): contract THW with THW.  Normalization deferred to the small
        # (hw, C) output tile: hw*C multiplies instead of hw*THW.
        y = lax.dot_general(p, fm, (((1,), (1,)), ((), ())),
                            preferred_element_type=jnp.float32)
        y = y * inv_l
    else:
        # (C, hw): lane-dense store when C < 128; wrapper transposes.
        # inv_l lives along sublanes here, so normalize p before the matmul
        # (a (hw,1)->(1,hw) relayout would need an XLU transpose).
        p = p * inv_l.astype(p.dtype)
        y = lax.dot_general(fm, p, (((1,), (1,)), ((), ())),
                            preferred_element_type=jnp.float32)
    o_ref[0] = y.astype(o_ref.dtype)


def _tpu_vmem_capacity_bytes():
    try:
        return int(pltpu.get_tpu_info().vmem_capacity_bytes)
    except Exception:
        return 64 * _MIB   # conservative (v7x-sized) fallback


def _tpu_has_bf16_eup():
    # v6e/v7x have bf16 VPU/EUP; v5e and older do not.  Unknown -> False.
    try:
        kind = jax.devices()[0].device_kind.lower()
    except Exception:
        return False
    return ("v6" in kind) or ("v7" in kind)


def _vmem_estimate(hw_tile, C, THW, in_item, out_item):
    # Double-buffered fm / fq / out blocks + ~4 live f32 (hw_tile, THW) slabs.
    return (2 * C * THW * in_item
            + 2 * C * hw_tile * in_item
            + 2 * hw_tile * C * out_item
            + 4 * hw_tile * THW * 4)


def memory_fuse(fm, fq, *, hw_tile=None, matmul_dtype=None, exp_dtype=None):
    """fm: (B, C, T, H, W), fq: (B, C, H, W) -> y: (B, HW, C).

    matmul_dtype=jnp.bfloat16 runs both GEMMs at native MXU rate on every TPU
    generation (incl. v5e, whose MXU is bf16-native); accumulation stays f32.
    Default (None) keeps f32-matmul parity with the PyTorch module.
    """
    B, C, T, H, W = fm.shape
    assert fq.shape == (B, C, H, W)
    THW, HW = T * H * W, H * W
    out_dtype = fm.dtype

    fm_flat = fm.reshape(B, C, THW)
    fq_flat = fq.reshape(B, C, HW)
    casted_inputs = False
    if matmul_dtype is not None and fm_flat.dtype != jnp.dtype(matmul_dtype):
        fm_flat = fm_flat.astype(matmul_dtype)
        fq_flat = fq_flat.astype(matmul_dtype)
        casted_inputs = True

    in_item = jnp.dtype(fm_flat.dtype).itemsize
    out_item = jnp.dtype(out_dtype).itemsize

    # Generation-aware VMEM budget (v7x: 64 MiB physical, v5e/v6e: 128 MiB).
    budget = int(0.75 * _tpu_vmem_capacity_bytes())

    # HW (query) tile: largest of {512, 256, 128} dividing HW that fits the
    # budget (>=256 fills the 256x256 MXU on v6e/v7x), else the full extent.
    if hw_tile is None:
        cands = [t for t in (512, 256, 128) if HW % t == 0]
        hw_tile = cands[-1] if cands else HW
        for t in cands:  # largest first
            if _vmem_estimate(t, C, THW, in_item, out_item) <= budget:
                hw_tile = t
                break
    assert HW % hw_tile == 0 and (hw_tile == HW or hw_tile % 128 == 0)
    num_hw = HW // hw_tile
    # TODO(synk): if the fm slab itself ever exceeds the VMEM budget, add a
    # THW-chunked online-softmax inner loop (flash pattern) instead of the
    # whole-THW score slab.

    channels_last_out = (C % 128 == 0)

    use_bf16_mm = (matmul_dtype is not None
                   and jnp.dtype(matmul_dtype) == jnp.dtype(jnp.bfloat16))
    if exp_dtype is None:
        exp_dtype = jnp.bfloat16 if (use_bf16_mm and _tpu_has_bf16_eup()) else jnp.float32

    kernel = functools.partial(
        _memory_fuse_kernel,
        inv_sqrt_c=1.0 / math.sqrt(C),
        channels_last_out=channels_last_out,
        exp_dtype=exp_dtype,
    )

    if channels_last_out:
        out_shape = jax.ShapeDtypeStruct((B, HW, C), out_dtype)
        out_spec = pl.BlockSpec((1, hw_tile, C), lambda b, q: (b, q, 0))
    else:
        out_shape = jax.ShapeDtypeStruct((B, C, HW), out_dtype)
        out_spec = pl.BlockSpec((1, C, hw_tile), lambda b, q: (b, 0, q))

    est = _vmem_estimate(hw_tile, C, THW, in_item, out_item)
    vmem_limit = int(min(max(est, 32 * _MIB), budget))

    cost = pl.CostEstimate(
        flops=4 * B * HW * THW * C,                 # two GEMMs: 2*M*N*K each
        transcendentals=B * HW * THW,               # exp
        bytes_accessed=(fm_flat.size * in_item + fq_flat.size * in_item
                        + B * HW * C * out_item),
    )

    y = pl.pallas_call(
        kernel,
        out_shape=out_shape,
        grid_spec=pltpu.PrefetchScalarGridSpec(
            num_scalar_prefetch=0,
            grid=(B, num_hw),
            in_specs=[
                pl.BlockSpec((1, C, THW), lambda b, q: (b, 0, 0)),   # fm resident over q
                pl.BlockSpec((1, C, hw_tile), lambda b, q: (b, 0, q)),
            ],
            out_specs=out_spec,
        ),
        compiler_params=pltpu.CompilerParams(
            dimension_semantics=("parallel", "parallel"),
            vmem_limit_bytes=vmem_limit,
            # Let XLA fuse the wrapper-side bf16 cast into the input pipeline
            # instead of a separate HBM round trip.
            allow_input_fusion=[True, True] if casted_inputs else None,
        ),
        cost_estimate=cost,
    )(fm_flat, fq_flat)

    if not channels_last_out:
        y = jnp.transpose(y, (0, 2, 1))  # (B, HW, C)
    return y


def memory_fuse_ref(fm, fq):
    """Pure-JAX reference matching the PyTorch forward."""
    B, C, T, H, W = fm.shape
    THW, HW = T * H * W, H * W
    fm_flat = fm.reshape(B, C, THW)
    fq_flat = fq.reshape(B, C, HW)
    w = jnp.einsum("bct,bcs->bts", fm_flat, fq_flat) / math.sqrt(C)
    w = jax.nn.softmax(w, axis=1)
    mem_info = jnp.einsum("bct,bts->bcs", fm_flat, w)
    return jnp.transpose(mem_info, (0, 2, 1))  # (B, HW, C)


def _run_case(key, B, C, T, H, W, matmul_dtype, tol, name):
    k1, k2 = jax.random.split(key)
    fm = jax.random.normal(k1, (B, C, T, H, W), dtype=jnp.float32)
    fq = jax.random.normal(k2, (B, C, H, W), dtype=jnp.float32)
    y_ref = memory_fuse_ref(fm, fq)
    y = jax.block_until_ready(memory_fuse(fm, fq, matmul_dtype=matmul_dtype))
    assert y.shape == (B, H * W, C), f"{name}: bad shape {y.shape}"
    assert jnp.allclose(y, y_ref, atol=tol, rtol=tol), f"{name}: kernel mismatch"


if __name__ == "__main__":
    key = jax.random.PRNGKey(0)
    keys = jax.random.split(key, 4)

    # Small shapes consistent with the module: B=2, C=32, T=2, H=W=8.
    # 1) f32 path, channels-first output orientation (C < 128).
    _run_case(keys[0], 2, 32, 2, 8, 8, None, 2e-3, "f32/C=32")
    # 2) bf16 MXU path (exercises input-fusion cast + bf16 exp on v6e/v7x).
    _run_case(keys[1], 2, 32, 2, 8, 8, jnp.bfloat16, 1e-1, "bf16/C=32")
    # 3) f32 path, channels-last output + deferred softmax normalization.
    _run_case(keys[2], 1, 128, 2, 8, 8, None, 2e-3, "f32/C=128")
    # 4) bf16 path, channels-last output.
    _run_case(keys[3], 1, 128, 2, 8, 8, jnp.bfloat16, 1e-1, "bf16/C=128")

    print("KERNEL_OK")
</pallas_src>

<mosaic_0001>
module attributes {stable_mosaic.version = 11 : i64} {
  func.func @_memory_fuse_kernel(%arg0: i32, %arg1: i32, %arg2: memref<1x32x128xf32, #tpu.memory_space<vmem>>, %arg3: memref<1x32x64xf32, #tpu.memory_space<vmem>>, %arg4: memref<1x32x64xf32, #tpu.memory_space<vmem>>) attributes {dimension_semantics = [#tpu.dimension_semantics<parallel>, #tpu.dimension_semantics<parallel>], iteration_bounds = array<i64: 2, 1>, scalar_prefetch = 0 : i64, scratch_operands = 0 : i64, tpu.core_type = #tpu.core_type<tc>, window_params = [{transform_indices = @transform_0, window_bounds = array<i64: 1, 32, 128>}, {transform_indices = @transform_1, window_bounds = array<i64: 1, 32, 64>}, {transform_indices = @transform_2, window_bounds = array<i64: 1, 32, 64>}]} {
    %c0 = arith.constant 0 : index
    %c0_0 = arith.constant 0 : index
    %c0_1 = arith.constant 0 : index
    %0 = vector.load %arg2[%c0, %c0_0, %c0_1] : memref<1x32x128xf32, #tpu.memory_space<vmem>>, vector<1x32x128xf32>
    %1 = vector.shape_cast %0 : vector<1x32x128xf32> to vector<32x128xf32>
    %c0_2 = arith.constant 0 : index
    %c0_3 = arith.constant 0 : index
    %c0_4 = arith.constant 0 : index
    %2 = vector.load %arg3[%c0_2, %c0_3, %c0_4] : memref<1x32x64xf32, #tpu.memory_space<vmem>>, vector<1x32x64xf32>
    %3 = vector.shape_cast %2 : vector<1x32x64xf32> to vector<32x64xf32>
    %cst = arith.constant 0.176776692 : f32
    %4 = vector.broadcast %cst : f32 to vector<32x64xf32>
    %5 = arith.mulf %3, %4 : vector<32x64xf32>
    %cst_5 = arith.constant dense<0.000000e+00> : vector<64x128xf32>
    %6 = tpu.matmul %5, %1, %cst_5 {dimension_numbers = #tpu.dot_dimension_numbers<[0], [0], [1], [1], [0, 1, 1, 1], [], []>} : vector<32x64xf32>, vector<32x128xf32>, vector<64x128xf32> -> vector<64x128xf32>
    %cst_6 = arith.constant dense<0xFF800000> : vector<64xf32>
    %7 = vector.multi_reduction <maximumf>, %6, %cst_6 [1] : vector<64x128xf32> to vector<64xf32>
    %8 = vector.shape_cast %7 : vector<64xf32> to vector<64x1xf32>
    %9 = vector.broadcast %8 : vector<64x1xf32> to vector<64x128xf32>
    %10 = arith.subf %6, %9 : vector<64x128xf32>
    %11 = math.exp %10 : vector<64x128xf32>
    %cst_7 = arith.constant dense<0.000000e+00> : vector<64xf32>
    %12 = vector.multi_reduction <add>, %11, %cst_7 [1] : vector<64x128xf32> to vector<64xf32>
    %13 = vector.shape_cast %12 : vector<64xf32> to vector<64x1xf32>
    %14 = tpu.reciprocal %13 {approx = true} : vector<64x1xf32> -> vector<64x1xf32>
    %15 = vector.broadcast %14 : vector<64x1xf32> to vector<64x128xf32>
    %16 = arith.mulf %11, %15 : vector<64x128xf32>
    %cst_8 = arith.constant dense<0.000000e+00> : vector<32x64xf32>
    %17 = tpu.matmul %1, %16, %cst_8 {dimension_numbers = #tpu.dot_dimension_numbers<[1], [1], [0], [0], [0, 0, 1, 0], [], []>} : vector<32x128xf32>, vector<64x128xf32>, vector<32x64xf32> -> vector<32x64xf32>
    %c0_9 = arith.constant 0 : index
    %c0_10 = arith.constant 0 : index
    %c0_11 = arith.constant 0 : index
    %18 = vector.load %arg4[%c0_9, %c0_10, %c0_11] : memref<1x32x64xf32, #tpu.memory_space<vmem>>, vector<1x32x64xf32>
    %19 = vector.shape_cast %18 : vector<1x32x64xf32> to vector<32x64xf32>
    %20 = vector.shape_cast %17 : vector<32x64xf32> to vector<1x32x64xf32>
    tpu.vector_store %arg4[%c0_9, %c0_10, %c0_11], %20 {strides = array<i32>} : memref<1x32x64xf32, #tpu.memory_space<vmem>>, vector<1x32x64xf32>,
    return
  }
  func.func @transform_0(%arg0: i32, %arg1: i32) -> (i32, i32, i32) {
    %c0_i32 = arith.constant 0 : i32
    %c0_i32_0 = arith.constant 0 : i32
    %c0_i32_1 = arith.constant 0 : i32
    return %arg0, %c0_i32, %c0_i32_0 : i32, i32, i32
  }
  func.func @transform_1(%arg0: i32, %arg1: i32) -> (i32, i32, i32) {
    %c0_i32 = arith.constant 0 : i32
    %c0_i32_0 = arith.constant 0 : i32
    return %arg0, %c0_i32, %arg1 : i32, i32, i32
  }
  func.func @transform_2(%arg0: i32, %arg1: i32) -> (i32, i32, i32) {
    %c0_i32 = arith.constant 0 : i32
    %c0_i32_0 = arith.constant 0 : i32
    return %arg0, %c0_i32, %arg1 : i32, i32, i32
  }
}

</mosaic_0001>

<llo_original>
// kernel: tpu_custom_call.1
$region0: #{tpu_custom_call.1}
  #allocation0 [shape = 'u32[]', space=smem, size = 0x4, offset = 0x4, fixed_abs, tag = 'smem constant byte address 0x4 - core index']
  #allocation1 [shape = 'u32[144,128]{1,0:T(1,128)}', space=vmem, size = 0x12000, scoped, tag = 'internal scratch']
  %s0 = inlined_call_operand.hbm [shape: f32[2,32,128], index: 0, kind: input, shape index: {}]
  %s1 = inlined_call_operand.hbm [shape: f32[2,32,64], index: 1, kind: input, shape index: {}]
  %s2 = inlined_call_operand.hbm [shape: f32[2,32,64], index: 2, kind: output, shape index: {}]
  %s3 = sld [smem:[#allocation0]]
  $region49: #{tpu_custom_call.1} parent=0
    _
  %s5 = ssub.s32 1, %s3
  %s6 = scalar_select 0, %s5, %s3
  $region1: #{tpu_custom_call.1} parent=0
    #allocation2 [shape = 'u8[32768]{0}', space=vmem, size = 0x8000, scoped, tag = 'input window, operand 0']
    #allocation3 [shape = 's32[2]{0}', space=sflag, size = 0x8, scoped, tag = 'scoped memory for tpu_custom_call.1']
    #allocation4 [shape = 's32[2]{0}', space=sflag, size = 0x8, scoped, tag = 'scoped memory for tpu_custom_call.1']
    #allocation5 [shape = 'u8[32768]{0}', space=vmem, size = 0x8000, scoped, tag = 'input window, operand 1']
    #allocation6 [shape = 's32[2]{0}', space=sflag, size = 0x8, scoped, tag = 'scoped memory for tpu_custom_call.1']
    #allocation7 [shape = 'u8[32768]{0}', space=vmem, size = 0x8000, scoped, tag = 'output window, operand 0']
    %7 = vsyncpa [#allocation3], 0
    %s8 = scalar_lea.sflag [#allocation3], 1
    %9 = vsyncpa %s8, 0
    %10 = vsyncpa [#allocation6], 0
    %s11 = scalar_lea.sflag [#allocation6], 1
    %12 = vsyncpa %s11, 0
    %13 = vsyncpa [#allocation4], 0
    %s14 = scalar_lea.sflag [#allocation4], 1
    %15 = vsyncpa %s14, 0
    loop: start=0, step=1, limit=4
    $region2: #{tpu_custom_call.1} parent=1 // loop_pre_header
      _
    $region3: #{tpu_custom_call.1} parent=1 // loop_header
      %s17 = sphi 0, %s21
      %p18 = scmp.ge.s32.totalorder %s17, 4
      %s24 = sphi 0, %s36
      %s25 = sphi 0, %s32
      %s26 = sphi 0, %s24
      %s27 = sphi 0, %s25
      %s28 = sphi 0, %s26
      %s29 = sphi 0, %s27
      %s39 = sphi 0, %s41
      %s42 = sphi 0, %s39
      %s43 = sphi 0, %s42
      %s59 = sphi 0, %s43
      %s67 = sphi 0, %s69
      %s70 = sphi 0, %s67
      %s71 = sphi 0, %s70
      %s87 = sphi 0, %s71
      %s95 = sphi 0, %s97
      %s98 = sphi 0, %s95
      %s99 = sphi 0, %s98
      %s115 = sphi 0, %s99
    $region4: #{tpu_custom_call.1} parent=1 // loop_header_branch
      %20 = sbr.rel (%p18) target = $region8
    $region5: #{tpu_custom_call.1} parent=1 // loop_body
      %s22 = ssub.s32 %s17, 1
      %s23 = ssub.s32 %s17, 2
      %s30 = sadd.s32 1, %s25
      %p31 = scmp.ge.s32.totalorder %s30, 1
      %s32 = scalar_select %p31, 0, %s30
      %s33 = sadd.s32 1, %s24
      %s34 = scalar_select %p31, %s33, %s24
      %p35 = scmp.ge.s32.totalorder %s34, 2
      %s36 = scalar_select %p35, 0, %s34
      %s37 = ssub.s32 %s24, %s36
      %p38 = scmp.eq.s32.totalorder %s37, 0
      %s40 = sadd.s32 %s39, 1
      %s41 = scalar_select %p38, %s39, %s40
      %p44 = pneg %p38
      %p45 = scmp.eq.s32.totalorder %s17, 1
      %p46 = por %p44, %p45
      %p47 = scmp.ne.s32.totalorder %s39, %s42
      %p48 = scmp.eq.s32.totalorder %s17, 0
      %p49 = por %p47, %p48
      %p50 = scmp.ne.s32.totalorder %s39, %s42
      %p51 = scmp.eq.s32.totalorder %s22, 1
      %p52 = por %p50, %p51
      %p53 = scmp.ne.s32.totalorder %s42, %s43
      %p54 = scmp.eq.s32.totalorder %s22, 0
      %p55 = por %p53, %p54
      %p56 = scmp.ne.s32.totalorder %s42, %s43
      %p57 = scmp.eq.s32.totalorder %s23, 1
      %p58 = por %p56, %p57
      %p60 = scmp.ne.s32.totalorder %s43, %s59
      %p61 = scmp.eq.s32.totalorder %s23, 0
      %p62 = por %p60, %p61
      %s63 = ssub.s32 %s24, %s36
      %s64 = ssub.s32 %s25, %s32
      %s65 = sor.u32 %s63, %s64
      %p66 = scmp.eq.s32.totalorder %s65, 0
      %s68 = sadd.s32 %s67, 1
      %s69 = scalar_select %p66, %s67, %s68
      %p72 = pneg %p66
      %p73 = scmp.eq.s32.totalorder %s17, 1
      %p74 = por %p72, %p73
      %p75 = scmp.ne.s32.totalorder %s67, %s70
      %p76 = scmp.eq.s32.totalorder %s17, 0
      %p77 = por %p75, %p76
      %p78 = scmp.ne.s32.totalorder %s67, %s70
      %p79 = scmp.eq.s32.totalorder %s22, 1
      %p80 = por %p78, %p79
      %p81 = scmp.ne.s32.totalorder %s70, %s71
      %p82 = scmp.eq.s32.totalorder %s22, 0
      %p83 = por %p81, %p82
      %p84 = scmp.ne.s32.totalorder %s70, %s71
      %p85 = scmp.eq.s32.totalorder %s23, 1
      %p86 = por %p84, %p85
      %p88 = scmp.ne.s32.totalorder %s71, %s87
      %p89 = scmp.eq.s32.totalorder %s23, 0
      %p90 = por %p88, %p89
      %s91 = ssub.s32 %s24, %s36
      %s92 = ssub.s32 %s25, %s32
      %s93 = sor.u32 %s91, %s92
      %p94 = scmp.eq.s32.totalorder %s93, 0
      %s96 = sadd.s32 %s95, 1
      %s97 = scalar_select %p94, %s95, %s96
      %p100 = pneg %p94
      %p101 = scmp.eq.s32.totalorder %s17, 1
      %p102 = por %p100, %p101
      %p103 = scmp.ne.s32.totalorder %s95, %s98
      %p104 = scmp.eq.s32.totalorder %s17, 0
      %p105 = por %p103, %p104
      %p106 = scmp.ne.s32.totalorder %s95, %s98
      %p107 = scmp.eq.s32.totalorder %s22, 1
      %p108 = por %p106, %p107
      %p109 = scmp.ne.s32.totalorder %s98, %s99
      %p110 = scmp.eq.s32.totalorder %s22, 0
      %p111 = por %p109, %p110
      %p112 = scmp.ne.s32.totalorder %s98, %s99
      %p113 = scmp.eq.s32.totalorder %s23, 1
      %p114 = por %p112, %p113
      %p116 = scmp.ne.s32.totalorder %s99, %s115
      %p117 = scmp.eq.s32.totalorder %s23, 0
      %p118 = por %p116, %p117
      %p119 = scmp.le.s32.totalorder 1, %s17
      %p120 = scmp.lt.s32.totalorder %s17, 3
      %p121 = pnand %p119, %p120
      %p122 = pneg %p121
      // Predicated region
      $region9: #{tpu_custom_call.1} parent=5 // pred_check
        _
      $region10: #{tpu_custom_call.1} parent=5 // pred_check_branch
        %124 = sbr.rel (%p121) target = $region12
      $region11: #{tpu_custom_call.1} parent=5 // pred_region
        %s125 = ssub.s32 %s17, 1
      $region12: #{tpu_custom_call.1} parent=5 // pred_fallthru
        _
      %p126 = scmp.lt.s32.totalorder %s17, 2
      // Predicated region
      $region13: #{tpu_custom_call.1} parent=5 // pred_check
        %p127 = pneg %p126
      $region14: #{tpu_custom_call.1} parent=5 // pred_check_branch
        %129 = sbr.rel (%p127) target = $region16
      $region15: #{tpu_custom_call.1} parent=5 // pred_region
        // Predicated region
        $region17: #{tpu_custom_call.1} parent=15 // pred_check
          %p130 = pneg %p49
        $region18: #{tpu_custom_call.1} parent=15 // pred_check_branch
          %132 = sbr.rel (%p130) target = $region20
        $region19: #{tpu_custom_call.1} parent=15 // pred_region
          %s133 = sand.u32 %s39, 1
          %s134 = scalar_lea.sflag [#allocation3], %s133
          %s135 = sand.u32 %s39, 1
          %s136 = smul.addr %s135, 32
          %s137 = scalar_lea.vmem [#allocation2], %s136
          %s139 = ssub.s32 512, 512
          %140 = vsyncadd %s134, %s139
          %s141 = smul.addr %s24, 4
          %s142 = smul.addr %s141, 128
          %s143 = scalar_lea.hbm %s0, %s142
          %s144 = sshll.u32 %s137, 4
          %s145 = int_to_ptr.vmem [resolvable:$true] %s144
          %150 = dma.hbm_to_vmem [thread:$0]  %s143, 512, %s145, %s134, 128, 128, 8
        $region20: #{tpu_custom_call.1} parent=15 // pred_fallthru
          _
        // Predicated region
        $region21: #{tpu_custom_call.1} parent=15 // pred_check
          %p151 = pneg %p77
        $region22: #{tpu_custom_call.1} parent=15 // pred_check_branch
          %153 = sbr.rel (%p151) target = $region24
        $region23: #{tpu_custom_call.1} parent=15 // pred_region
          %s154 = sand.u32 %s67, 1
          %s155 = scalar_lea.sflag [#allocation6], %s154
          %s156 = sand.u32 %s67, 1
          %s157 = smul.addr %s156, 32
          %s158 = scalar_lea.vmem [#allocation5], %s157
          %s160 = ssub.s32 512, 512
          %161 = vsyncadd %s155, %s160
          %s162 = smul.addr %s24, 4
          %s163 = sadd.s32 %s25, %s162
          %s164 = smul.addr %s163, 128
          %s165 = scalar_lea.hbm %s1, %s164
          %s166 = sshll.u32 %s158, 4
          %s167 = int_to_ptr.vmem [resolvable:$true] %s166
          %172 = dma.hbm_to_vmem [thread:$0]  %s165, 512, %s167, %s155, 128, 128, 8
        $region24: #{tpu_custom_call.1} parent=15 // pred_fallthru
          _
      $region16: #{tpu_custom_call.1} parent=5 // pred_fallthru
        _
      %p173 = scmp.le.s32.totalorder 1, %s17
      %p174 = scmp.lt.s32.totalorder %s17, 3
      %p175 = pnand %p173, %p174
      %p176 = pneg %p175
      // Predicated region
      $region25: #{tpu_custom_call.1} parent=5 // pred_check
        _
      $region26: #{tpu_custom_call.1} parent=5 // pred_check_branch
        %178 = sbr.rel (%p175) target = $region28
      $region27: #{tpu_custom_call.1} parent=5 // pred_region
        %s179 = ssub.s32 %s17, 1
        %s180 = sand.u32 %s42, 1
        %s181 = scalar_lea.sflag [#allocation3], %s180
        %s182 = sand.u32 %s42, 1
        %s183 = smul.addr %s182, 32
        %s184 = scalar_lea.vmem [#allocation2], %s183
        // Predicated region
        $region29: #{tpu_custom_call.1} parent=27 // pred_check
          %p185 = pneg %p55
        $region30: #{tpu_custom_call.1} parent=27 // pred_check_branch
          %187 = sbr.rel (%p185) target = $region32
        $region31: #{tpu_custom_call.1} parent=27 // pred_region
          %188 = dma.done %s181, 512
        $region32: #{tpu_custom_call.1} parent=27 // pred_fallthru
          _
        %s189 = sand.u32 %s70, 1
        %s190 = scalar_lea.sflag [#allocation6], %s189
        %s191 = sand.u32 %s70, 1
        %s192 = smul.addr %s191, 32
        %s193 = scalar_lea.vmem [#allocation5], %s192
        // Predicated region
        $region33: #{tpu_custom_call.1} parent=27 // pred_check
          %p194 = pneg %p83
        $region34: #{tpu_custom_call.1} parent=27 // pred_check_branch
          %196 = sbr.rel (%p194) target = $region36
        $region35: #{tpu_custom_call.1} parent=27 // pred_region
          %197 = dma.done %s190, 512
        $region36: #{tpu_custom_call.1} parent=27 // pred_fallthru
          _
        %s198 = sand.u32 %s42, 1
        %s199 = scalar_lea.sflag [#allocation3], %s198
        %s200 = sand.u32 %s42, 1
        %s201 = smul.addr %s200, 32
        %s202 = scalar_lea.vmem [#allocation2], %s201
        %p203 = pneg %p55
        %p204 = pneg %p52
        %s205 = sand.u32 %s70, 1
        %s206 = scalar_lea.sflag [#allocation6], %s205
        %s207 = sand.u32 %s70, 1
        %s208 = smul.addr %s207, 32
        %s209 = scalar_lea.vmem [#allocation5], %s208
        %p210 = pneg %p83
        %p211 = pneg %p80
        %p212 = pneg %p111
        %p213 = pneg %p108
        %s214 = sand.u32 %s98, 1
        %s215 = scalar_lea.sflag [#allocation4], %s214
        %s216 = sand.u32 %s98, 1
        %s217 = smul.addr %s216, 32
        %s218 = scalar_lea.vmem [#allocation7], %s217
        %v219 = vld [vmem:[%s184] sm:$0xff]
        %v220 = vld [vmem:[%s184 + $0x8] sm:$0xff]
        %v221 = vld [vmem:[%s184 + $0x10] sm:$0xff]
        %v222 = vld [vmem:[%s184 + $0x18] sm:$0xff]
        %v223 = vld [vmem:[%s193] sm:$0xff]
        %v224 = vld [vmem:[%s193 + $0x8] sm:$0xff]
        %v225 = vld [vmem:[%s193 + $0x10] sm:$0xff]
        %v226 = vld [vmem:[%s193 + $0x18] sm:$0xff]
        %v227 = vmul.f32 %v223, 0.17677669
        %v228 = vmul.f32 %v224, 0.17677669
        %v229 = vmul.f32 %v225, 0.17677669
        %v230 = vmul.f32 %v226, 0.17677669
        %231 = vxpose.xlu0.b32.start [1/16] %v227, 128
        %232 = vxpose.xlu0.b32.cont [2/16] %v228, 128
        %233 = vxpose.xlu0.b32.cont [3/16] %v229, 128
        %234 = vxpose.xlu0.b32.cont [4/16] %v230, 128
        %235 = vxpose.xlu0.b32.cont [5/16] 0.0, 128
        %236 = vxpose.xlu0.b32.cont [6/16] 0.0, 128
        %237 = vxpose.xlu0.b32.cont [7/16] 0.0, 128
        %238 = vxpose.xlu0.b32.cont [8/16] 0.0, 128
        %239 = vxpose.xlu0.b32.cont [9/16] 0.0, 128
        %240 = vxpose.xlu0.b32.cont [10/16] 0.0, 128
        %241 = vxpose.xlu0.b32.cont [11/16] 0.0, 128
        %242 = vxpose.xlu0.b32.cont [12/16] 0.0, 128
        %243 = vxpose.xlu0.b32.cont [13/16] 0.0, 128
        %244 = vxpose.xlu0.b32.cont [14/16] 0.0, 128
        %245 = vxpose.xlu0.b32.cont [15/16] 0.0, 128
        %246 = vxpose.xlu0.b32.end [16/16] 0.0, 128
        %v247 = vpop.trf.xlu0
        %v248 = vpop.trf.xlu0
        %v249 = vpop.trf.xlu0
        %v250 = vpop.trf.xlu0
        %v251 = vpop.trf.xlu0
        %v252 = vpop.trf.xlu0
        %v253 = vpop.trf.xlu0
        %v254 = vpop.trf.xlu0
        %v255 = vpop.trf.xlu0
        %v256 = vpop.trf.xlu0
        %v257 = vpop.trf.xlu0
        %v258 = vpop.trf.xlu0
        %v259 = vpop.trf.xlu0
        %v260 = vpop.trf.xlu0
        %v261 = vpop.trf.xlu0
        %v262 = vpop.trf.xlu0
        %vm263 = vcmask 261120
        %v265 = vsel %vm263, %v247, 0
        %v268 = vsel %vm263, %v248, 0
        %v271 = vsel %vm263, %v249, 0
        %v274 = vsel %vm263, %v250, 0
        %v277 = vsel %vm263, %v251, 0
        %v280 = vsel %vm263, %v252, 0
        %v283 = vsel %vm263, %v253, 0
        %v286 = vsel %vm263, %v254, 0
        %288 = vmatprep.subr.mxu0 0.0
        %289 = vmatpush1.msra.mxu0 %v219
        %290 = vmatprep.subr.mxu0 0.0
        %291 = vmatpush1.msra.mxu0 %v220
        %292 = vmatprep.subr.mxu0 0.0
        %293 = vmatpush1.msra.mxu0 %v221
        %294 = vmatprep.subr.mxu0 0.0
        %295 = vmatpush1.msra.mxu0 %v222
        %296 = vmatprep.subr.mxu0 0.0
        %297 = vmatpush1.msra.mxu0 0.0
        %298 = vmatprep.subr.mxu0 0.0
        %299 = vmatpush1.msra.mxu0 0.0
        %300 = vmatprep.subr.mxu0 0.0
        %301 = vmatpush1.msra.mxu0 0.0
        %302 = vmatprep.subr.mxu0 0.0
        %303 = vmatpush1.msra.mxu0 0.0
        %304 = vmatprep.subr.mxu0 0.0
        %305 = vmatpush1.msra.mxu0 0.0
        %306 = vmatprep.subr.mxu0 0.0
        %307 = vmatpush1.msra.mxu0 0.0
        %308 = vmatprep.subr.mxu0 0.0
        %309 = vmatpush1.msra.mxu0 0.0
        %310 = vmatprep.subr.mxu0 0.0
        %311 = vmatpush1.msra.mxu0 0.0
        %312 = vmatprep.subr.mxu0 0.0
        %313 = vmatpush1.msra.mxu0 0.0
        %314 = vmatprep.subr.mxu0 0.0
        %315 = vmatpush1.msra.mxu0 0.0
        %316 = vmatprep.subr.mxu0 0.0
        %317 = vmatpush1.msra.mxu0 0.0
        %318 = vmatprep.subr.mxu0 0.0
        %319 = vmatpush1.msra.mxu0 0.0
        %320 = vmatprep.subr.mxu0 0.0
        %321 = vmatpush1.msra.mxu0 0.0
        %322 = vmatprep.subr.mxu0 0.0
        %323 = vmatpush1.msra.mxu0 0.0
        %324 = vmatprep.subr.mxu0 0.0
        %325 = vmatpush1.msra.mxu0 0.0
        %326 = vmatprep.subr.mxu0 0.0
        %327 = vmatpush1.msra.mxu0 0.0
        %328 = vmatprep.subr.mxu0 0.0
        %329 = vmatpush1.msra.mxu0 0.0
        %330 = vmatprep.subr.mxu0 0.0
        %331 = vmatpush1.msra.mxu0 0.0
        %332 = vmatprep.subr.mxu0 0.0
        %333 = vmatpush1.msra.mxu0 0.0
        %334 = vmatprep.subr.mxu0 0.0
        %335 = vmatpush1.msra.mxu0 0.0
        %336 = vmatprep.subr.mxu0 0.0
        %337 = vmatpush1.msra.mxu0 0.0
        %338 = vmatprep.subr.mxu0 0.0
        %339 = vmatpush1.msra.mxu0 0.0
        %340 = vmatprep.subr.mxu0 0.0
        %341 = vmatpush1.msra.mxu0 0.0
        %342 = vmatprep.subr.mxu0 0.0
        %343 = vmatpush1.msra.mxu0 0.0
        %344 = vmatprep.subr.mxu0 0.0
        %345 = vmatpush1.msra.mxu0 0.0
        %346 = vmatprep.subr.mxu0 0.0
        %347 = vmatpush1.msra.mxu0 0.0
        %348 = vmatprep.subr.mxu0 0.0
        %349 = vmatpush1.msra.mxu0 0.0
        %350 = vmatprep.subr.mxu0 0.0
        %351 = vmatpush1.msra.mxu0 0.0
        %352 = vmatprep.mubr.f32.mxu0 0.0
        %353 = vmatmul.mubr.f32.gmra.mrb[0].mxu0 %v265
        %v354 = vpop.f32.mrb[0].mxu0
        %v355 = vadd.f32 0.0, %v354
        %v356 = vpop.f32.mrb[0].mxu0
        %357 = vmatprep.mubr.f32.mxu0 0.0
        %358 = vmatmul.mubr.f32.gmra.mrb[0].mxu0 %v268
        %v359 = vpop.f32.mrb[0].mxu0
        %v360 = vadd.f32 0.0, %v359
        %v361 = vpop.f32.mrb[0].mxu0
        %362 = vmatprep.mubr.f32.mxu0 0.0
        %363 = vmatmul.mubr.f32.gmra.mrb[0].mxu0 %v271
        %v364 = vpop.f32.mrb[0].mxu0
        %v365 = vadd.f32 0.0, %v364
        %v366 = vpop.f32.mrb[0].mxu0
        %367 = vmatprep.mubr.f32.mxu0 0.0
        %368 = vmatmul.mubr.f32.gmra.mrb[0].mxu0 %v274
        %v369 = vpop.f32.mrb[0].mxu0
        %v370 = vadd.f32 0.0, %v369
        %v371 = vpop.f32.mrb[0].mxu0
        %372 = vmatprep.mubr.f32.mxu0 0.0
        %373 = vmatmul.mubr.f32.gmra.mrb[0].mxu0 %v277
        %v374 = vpop.f32.mrb[0].mxu0
        %v375 = vadd.f32 0.0, %v374
        %v376 = vpop.f32.mrb[0].mxu0
        %377 = vmatprep.mubr.f32.mxu0 0.0
        %378 = vmatmul.mubr.f32.gmra.mrb[0].mxu0 %v280
        %v379 = vpop.f32.mrb[0].mxu0
        %v380 = vadd.f32 0.0, %v379
        %v381 = vpop.f32.mrb[0].mxu0
        %382 = vmatprep.mubr.f32.mxu0 0.0
        %383 = vmatmul.mubr.f32.gmra.mrb[0].mxu0 %v283
        %v384 = vpop.f32.mrb[0].mxu0
        %v385 = vadd.f32 0.0, %v384
        %v386 = vpop.f32.mrb[0].mxu0
        %387 = vmatprep.mubr.f32.mxu0 0.0
        %388 = vmatmul.mubr.f32.gmra.mrb[0].mxu0 %v286
        %v389 = vpop.f32.mrb[0].mxu0
        %v390 = vadd.f32 0.0, %v389
        %v391 = vpop.f32.mrb[0].mxu0
        %392 = vdwg.mxu0
        %393 = vmax.xlane.f32.xlu0 %v355
        %v394 = vpop.xlane.xlu0 %393
        %395 = vmax.xlane.f32.xlu0 %v360
        %v396 = vpop.xlane.xlu0 %395
        %397 = vmax.xlane.f32.xlu0 %v365
        %v398 = vpop.xlane.xlu0 %397
        %399 = vmax.xlane.f32.xlu0 %v370
        %v400 = vpop.xlane.xlu0 %399
        %401 = vmax.xlane.f32.xlu0 %v375
        %v402 = vpop.xlane.xlu0 %401
        %403 = vmax.xlane.f32.xlu0 %v380
        %v404 = vpop.xlane.xlu0 %403
        %405 = vmax.xlane.f32.xlu0 %v385
        %v406 = vpop.xlane.xlu0 %405
        %407 = vmax.xlane.f32.xlu0 %v390
        %v408 = vpop.xlane.xlu0 %407
        %v409 = vsub.f32 %v355, %v394
        %v410 = vsub.f32 %v360, %v396
        %v411 = vsub.f32 %v365, %v398
        %v412 = vsub.f32 %v370, %v400
        %v413 = vsub.f32 %v375, %v402
        %v414 = vsub.f32 %v380, %v404
        %v415 = vsub.f32 %v385, %v406
        %v416 = vsub.f32 %v390, %v408
        %v417 = vmul.f32 %v409, 1.442695
        %v418 = vpow.pop %v417
        %v419 = vmul.f32 %v410, 1.442695
        %v420 = vpow.pop %v419
        %v421 = vmul.f32 %v411, 1.442695
        %v422 = vpow.pop %v421
        %v423 = vmul.f32 %v412, 1.442695
        %v424 = vpow.pop %v423
        %v425 = vmul.f32 %v413, 1.442695
        %v426 = vpow.pop %v425
        %v427 = vmul.f32 %v414, 1.442695
        %v428 = vpow.pop %v427
        %v429 = vmul.f32 %v415, 1.442695
        %v430 = vpow.pop %v429
        %v431 = vmul.f32 %v416, 1.442695
        %v432 = vpow.pop %v431
        %433 = vadd.xlane.f32.xlu0 %v418
        %v434 = vpop.xlane.xlu0 %433
        %435 = vadd.xlane.f32.xlu0 %v420
        %v436 = vpop.xlane.xlu0 %435
        %437 = vadd.xlane.f32.xlu0 %v422
        %v438 = vpop.xlane.xlu0 %437
        %439 = vadd.xlane.f32.xlu0 %v424
        %v440 = vpop.xlane.xlu0 %439
        %441 = vadd.xlane.f32.xlu0 %v426
        %v442 = vpop.xlane.xlu0 %441
        %443 = vadd.xlane.f32.xlu0 %v428
        %v444 = vpop.xlane.xlu0 %443
        %445 = vadd.xlane.f32.xlu0 %v430
        %v446 = vpop.xlane.xlu0 %445
        %447 = vadd.xlane.f32.xlu0 %v432
        %v448 = vpop.xlane.xlu0 %447
        %v449 = vrcp.pop %v434
        %v450 = vrcp.pop %v436
        %v451 = vrcp.pop %v438
        %v452 = vrcp.pop %v440
        %v453 = vrcp.pop %v442
        %v454 = vrcp.pop %v444
        %v455 = vrcp.pop %v446
        %v456 = vrcp.pop %v448
        %v457 = vmul.f32 %v418, %v449
        %v458 = vmul.f32 %v420, %v450
        %v459 = vmul.f32 %v422, %v451
        %v460 = vmul.f32 %v424, %v452
        %v461 = vmul.f32 %v426, %v453
        %v462 = vmul.f32 %v428, %v454
        %v463 = vmul.f32 %v430, %v455
        %v464 = vmul.f32 %v432, %v456
        %465 = vmatprep.subr.mxu0 0.0
        %466 = vmatpush1.xpose.msra.mxu0 %v457
        %467 = vmatprep.subr.mxu0 0.0
        %468 = vmatpush1.xpose.msra.mxu0 %v458
        %469 = vmatprep.subr.mxu0 0.0
        %470 = vmatpush1.xpose.msra.mxu0 %v459
        %471 = vmatprep.subr.mxu0 0.0
        %472 = vmatpush1.xpose.msra.mxu0 %v460
        %473 = vmatprep.subr.mxu0 0.0
        %474 = vmatpush1.xpose.msra.mxu0 %v461
        %475 = vmatprep.subr.mxu0 0.0
        %476 = vmatpush1.xpose.msra.mxu0 %v462
        %477 = vmatprep.subr.mxu0 0.0
        %478 = vmatpush1.xpose.msra.mxu0 %v463
        %479 = vmatprep.subr.mxu0 0.0
        %480 = vmatpush1.xpose.msra.mxu0 %v464
        %481 = vmatprep.subr.mxu0 0.0
        %482 = vmatpush1.xpose.msra.mxu0 0.0
        %483 = vmatprep.subr.mxu0 0.0
        %484 = vmatpush1.xpose.msra.mxu0 0.0
        %485 = vmatprep.subr.mxu0 0.0
        %486 = vmatpush1.xpose.msra.mxu0 0.0
        %487 = vmatprep.subr.mxu0 0.0
        %488 = vmatpush1.xpose.msra.mxu0 0.0
        %489 = vmatprep.subr.mxu0 0.0
        %490 = vmatpush1.xpose.msra.mxu0 0.0
        %491 = vmatprep.subr.mxu0 0.0
        %492 = vmatpush1.xpose.msra.mxu0 0.0
        %493 = vmatprep.subr.mxu0 0.0
        %494 = vmatpush1.xpose.msra.mxu0 0.0
        %495 = vmatprep.subr.mxu0 0.0
        %496 = vmatpush1.xpose.msra.mxu0 0.0
        %497 = vmatprep.subr.mxu0 0.0
        %498 = vmatpush1.xpose.msra.mxu0 0.0
        %499 = vmatprep.subr.mxu0 0.0
        %500 = vmatpush1.xpose.msra.mxu0 0.0
        %501 = vmatprep.subr.mxu0 0.0
        %502 = vmatpush1.xpose.msra.mxu0 0.0
        %503 = vmatprep.subr.mxu0 0.0
        %504 = vmatpush1.xpose.msra.mxu0 0.0
        %505 = vmatprep.subr.mxu0 0.0
        %506 = vmatpush1.xpose.msra.mxu0 0.0
        %507 = vmatprep.subr.mxu0 0.0
        %508 = vmatpush1.xpose.msra.mxu0 0.0
        %509 = vmatprep.subr.mxu0 0.0
        %510 = vmatpush1.xpose.msra.mxu0 0.0
        %511 = vmatprep.subr.mxu0 0.0
        %512 = vmatpush1.xpose.msra.mxu0 0.0
        %513 = vmatprep.subr.mxu0 0.0
        %514 = vmatpush1.xpose.msra.mxu0 0.0
        %515 = vmatprep.subr.mxu0 0.0
        %516 = vmatpush1.xpose.msra.mxu0 0.0
        %517 = vmatprep.subr.mxu0 0.0
        %518 = vmatpush1.xpose.msra.mxu0 0.0
        %519 = vmatprep.subr.mxu0 0.0
        %520 = vmatpush1.xpose.msra.mxu0 0.0
        %521 = vmatprep.subr.mxu0 0.0
        %522 = vmatpush1.xpose.msra.mxu0 0.0
        %523 = vmatprep.subr.mxu0 0.0
        %524 = vmatpush1.xpose.msra.mxu0 0.0
        %525 = vmatprep.subr.mxu0 0.0
        %526 = vmatpush1.xpose.msra.mxu0 0.0
        %527 = vmatprep.subr.mxu0 0.0
        %528 = vmatpush1.xpose.msra.mxu0 0.0
        %529 = vmatprep.mubr.f32.mxu0 0.0
        %530 = vmatmul.mubr.f32.gmra.mrb[0].mxu0 %v219
        %v531 = vpop.f32.mrb[0].mxu0
        %v532 = vadd.f32 0.0, %v531
        %v533 = vpop.f32.mrb[0].mxu0
        %534 = vmatprep.mubr.f32.mxu0 0.0
        %535 = vmatmul.mubr.f32.gmra.mrb[0].mxu0 %v220
        %v536 = vpop.f32.mrb[0].mxu0
        %v537 = vadd.f32 0.0, %v536
        %v538 = vpop.f32.mrb[0].mxu0
        %539 = vmatprep.mubr.f32.mxu0 0.0
        %540 = vmatmul.mubr.f32.gmra.mrb[0].mxu0 %v221
        %v541 = vpop.f32.mrb[0].mxu0
        %v542 = vadd.f32 0.0, %v541
        %v543 = vpop.f32.mrb[0].mxu0
        %544 = vmatprep.mubr.f32.mxu0 0.0
        %545 = vmatmul.mubr.f32.gmra.mrb[0].mxu0 %v222
        %v546 = vpop.f32.mrb[0].mxu0
        %v547 = vadd.f32 0.0, %v546
        %v548 = vpop.f32.mrb[0].mxu0
        %549 = vdwg.mxu0
        %vm550 = vcmask 523264
        %551 = vst.msk [vmem:[%s218] sm:$0xff] %vm550, %v532
        %552 = vst.msk [vmem:[%s218 + $0x8] sm:$0xff] %vm550, %v537
        %553 = vst.msk [vmem:[%s218 + $0x10] sm:$0xff] %vm550, %v542
        %554 = vst.msk [vmem:[%s218 + $0x18] sm:$0xff] %vm550, %v547
        %s555 = sand.u32 %s98, 1
        %s556 = scalar_lea.sflag [#allocation4], %s555
        %s557 = sand.u32 %s98, 1
        %s558 = smul.addr %s557, 32
        %s559 = scalar_lea.vmem [#allocation7], %s558
        // Predicated region
        $region37: #{tpu_custom_call.1} parent=27 // pred_check
          %p560 = pneg %p108
        $region38: #{tpu_custom_call.1} parent=27 // pred_check_branch
          %562 = sbr.rel (%p560) target = $region40
        $region39: #{tpu_custom_call.1} parent=27 // pred_region
          %s564 = ssub.s32 512, 512
          %565 = vsyncadd %s556, %s564
          %s566 = smul.addr %s26, 4
          %s567 = sadd.s32 %s27, %s566
          %s568 = smul.addr %s567, 128
          %s569 = scalar_lea.hbm %s2, %s568
          %s570 = sshll.u32 %s559, 4
          %s571 = int_to_ptr.vmem [resolvable:$true] %s570
          %576 = dma.vmem_to_hbm [thread:$0]  %s571, 512, %s569, %s556, 128, 128, 8
        $region40: #{tpu_custom_call.1} parent=27 // pred_fallthru
          _
      $region28: #{tpu_custom_call.1} parent=5 // pred_fallthru
        _
      %p577 = scmp.le.s32.totalorder 2, %s17
      // Predicated region
      $region41: #{tpu_custom_call.1} parent=5 // pred_check
        %p578 = pneg %p577
      $region42: #{tpu_custom_call.1} parent=5 // pred_check_branch
        %580 = sbr.rel (%p578) target = $region44
      $region43: #{tpu_custom_call.1} parent=5 // pred_region
        %s581 = ssub.s32 %s17, 2
        // Predicated region
        $region45: #{tpu_custom_call.1} parent=43 // pred_check
          %p582 = pneg %p114
        $region46: #{tpu_custom_call.1} parent=43 // pred_check_branch
          %584 = sbr.rel (%p582) target = $region48
        $region47: #{tpu_custom_call.1} parent=43 // pred_region
          %s585 = sand.u32 %s99, 1
          %s586 = scalar_lea.sflag [#allocation4], %s585
          %s587 = sand.u32 %s99, 1
          %s588 = smul.addr %s587, 32
          %s589 = scalar_lea.vmem [#allocation7], %s588
          %590 = dma.done %s586, 512
        $region48: #{tpu_custom_call.1} parent=43 // pred_fallthru
          _
      $region44: #{tpu_custom_call.1} parent=5 // pred_fallthru
        _
    $region6: #{tpu_custom_call.1} parent=1 // loop_footer
      %s21 = sadd.s32 1, %s17
    $region7: #{tpu_custom_call.1} parent=1 // loop_footer_branch
      %16 = sbr.rel target = $region3
    $region8: #{tpu_custom_call.1} parent=1 // loop_exit
      _
    %591 = vsyncpa [#allocation3], 1
    %s592 = scalar_lea.sflag [#allocation3], 1
    %593 = vsyncpa %s592, 1
    %594 = vsyncpa [#allocation6], 1
    %s595 = scalar_lea.sflag [#allocation6], 1
    %596 = vsyncpa %s595, 1
    %597 = vsyncpa [#allocation4], 1
    %s598 = scalar_lea.sflag [#allocation4], 1
    %599 = vsyncpa %s598, 1

</llo_original>
